<compile_context>
chip_gen: v5e
topology: v5e:2x2
jax: 0.10.0
libtpu: 0.0.40
codegen_flags: <defaults>
</compile_context>

<pallas_src>
import math
import jax
import jax.numpy as jnp
from jax.experimental import pallas as pl
from jax.experimental.pallas import tpu as pltpu


def _value_mlp_kernel(x_ref, w1_ref, aux_ref, b2_ref, o_ref):
    aux = aux_ref[...]                       # (2, H): row 0 = b1, row 1 = w2^T
    b1 = aux[0:1, :]                         # (1, H)
    w2_row = aux[1:2, :]                     # (1, H)

    # Layer 1 on the MXU: (Bt, S) @ (S, H); bias add on VPU, tanh on EUP.
    h = jnp.dot(x_ref[...], w1_ref[...], preferred_element_type=jnp.float32)
    h = jnp.tanh(h + b1)                     # (Bt, H)

    # Layer 2 on VPU + XLU: an N=1 matmul is just a per-row dot product.
    out = jnp.sum(h * w2_row, axis=-1, keepdims=True)      # (Bt, 1)
    o_ref[...] = jnp.tanh(out + b2_ref[0]).astype(o_ref.dtype)
    # TODO(synk): for very large batches, emit a lane-dense (1, Bt) output slab
    # (reshape in the wrapper) and pack 4 batch groups along lanes so the H=32
    # tanh/reduce does not run on quarter-filled vregs; also benchmark a bf16
    # MXU / VPU-unrolled layer 1 (keep post-matmul math f32 for v5e).


def control_2_value_forward(state, w1, b1, w2, b2, *, block_rows=512):
    """state: (B, state_size) f32; returns (B, 1) f32."""
    B, S = state.shape
    H = w1.shape[1]
    assert w1.shape == (S, H) and b1.shape == (1, H)
    assert w2.shape == (H, 1) and b2.shape == (1, 1)

    # One merged (2, H) VMEM operand: [b1 ; w2^T].  One fewer DMA per call.
    aux = jnp.concatenate([b1.reshape(1, H), w2.reshape(1, H)], axis=0)
    b2_s = b2.reshape((1,))                  # 1-D SMEM scalar (no 2-D padding)

    vmem = pltpu.MemorySpace.VMEM
    smem = pltpu.MemorySpace.SMEM

    if B <= block_rows:
        # Single-shot: whole problem resident in VMEM/SMEM, no grid/pipeline.
        return pl.pallas_call(
            _value_mlp_kernel,
            out_shape=jax.ShapeDtypeStruct((B, 1), jnp.float32),
            in_specs=[
                pl.BlockSpec(memory_space=vmem),   # state (B, S)
                pl.BlockSpec(memory_space=vmem),   # W1    (S, H)
                pl.BlockSpec(memory_space=vmem),   # aux   (2, H)
                pl.BlockSpec(memory_space=smem),   # b2    (1,)
            ],
            out_specs=pl.BlockSpec(memory_space=vmem),
        )(state, w1, aux, b2_s)

    # Large batch: stream >=512-row state tiles through a pipelined grid while
    # the weights stay VMEM-resident (constant block index -> DMA'd once).
    num_blocks = pl.cdiv(B, block_rows)
    Bp = num_blocks * block_rows
    state_p = state if Bp == B else jnp.pad(state, ((0, Bp - B), (0, 0)))

    out = pl.pallas_call(
        _value_mlp_kernel,
        out_shape=jax.ShapeDtypeStruct((Bp, 1), jnp.float32),
        grid=(num_blocks,),
        in_specs=[
            pl.BlockSpec((block_rows, S), lambda i: (i, 0)),   # state streams
            pl.BlockSpec((S, H), lambda i: (0, 0)),            # W1 resident
            pl.BlockSpec((2, H), lambda i: (0, 0)),            # aux resident
            pl.BlockSpec(memory_space=smem),                   # b2 scalar
        ],
        out_specs=pl.BlockSpec((block_rows, 1), lambda i: (i, 0)),
        compiler_params=pltpu.CompilerParams(
            dimension_semantics=("parallel",),                 # v7x: 2 TCs split batch
        ),
    )(state_p, w1, aux, b2_s)
    return out[:B]


def init_params(key, state_size, hidden_layer_size):
    """Deterministic init mimicking torch.nn.Linear default U[-1/sqrt(fan_in), 1/sqrt(fan_in)]."""
    k1, k2, k3, k4 = jax.random.split(key, 4)
    bound1 = 1.0 / math.sqrt(state_size)
    bound2 = 1.0 / math.sqrt(hidden_layer_size)
    w1 = jax.random.uniform(k1, (state_size, hidden_layer_size), jnp.float32,
                            minval=-bound1, maxval=bound1)
    b1 = jax.random.uniform(k2, (1, hidden_layer_size), jnp.float32,
                            minval=-bound1, maxval=bound1)
    w2 = jax.random.uniform(k3, (hidden_layer_size, 1), jnp.float32,
                            minval=-bound2, maxval=bound2)
    b2 = jax.random.uniform(k4, (1, 1), jnp.float32,
                            minval=-bound2, maxval=bound2)
    return w1, b1, w2, b2


if __name__ == "__main__":
    key = jax.random.PRNGKey(0)
    state_size = 16
    hidden_layer_size = 32

    k_params, k_small, k_big = jax.random.split(key, 3)
    w1, b1, w2, b2 = init_params(k_params, state_size, hidden_layer_size)

    def reference(s):
        return jnp.tanh(jnp.tanh(s @ w1 + b1) @ w2 + b2)

    # Small batch -> gridless single-shot path.
    state_small = jax.random.normal(k_small, (8, state_size), jnp.float32)
    out_small = jax.block_until_ready(
        control_2_value_forward(state_small, w1, b1, w2, b2))
    assert out_small.shape == (8, 1)
    assert jnp.allclose(out_small, reference(state_small), atol=1e-5, rtol=1e-5)

    # Larger batch -> batch-tiled grid path (weights VMEM-resident, ragged
    # batch padded to a multiple of the 512-row tile and sliced off).
    state_big = jax.random.normal(k_big, (1100, state_size), jnp.float32)
    out_big = jax.block_until_ready(
        control_2_value_forward(state_big, w1, b1, w2, b2))
    assert out_big.shape == (1100, 1)
    assert jnp.allclose(out_big, reference(state_big), atol=1e-5, rtol=1e-5)

    print("KERNEL_OK")
</pallas_src>

<mosaic_0001>
module attributes {stable_mosaic.version = 11 : i64} {
  func.func @_value_mlp_kernel(%arg0: memref<8x16xf32, #tpu.memory_space<vmem>>, %arg1: memref<16x32xf32, #tpu.memory_space<vmem>>, %arg2: memref<2x32xf32, #tpu.memory_space<vmem>>, %arg3: memref<1xf32, #tpu.memory_space<smem>>, %arg4: memref<8x1xf32, #tpu.memory_space<vmem>>) attributes {dimension_semantics = [], scalar_prefetch = 0 : i64, scratch_operands = 0 : i64, tpu.core_type = #tpu.core_type<tc>} {
    %c0 = arith.constant 0 : index
    %c0_0 = arith.constant 0 : index
    %0 = vector.load %arg2[%c0, %c0_0] : memref<2x32xf32, #tpu.memory_space<vmem>>, vector<2x32xf32>
    %1 = vector.extract_strided_slice %0 {offsets = [0, 0], sizes = [1, 32], strides = [1, 1]} : vector<2x32xf32> to vector<1x32xf32>
    %2 = vector.extract_strided_slice %0 {offsets = [1, 0], sizes = [1, 32], strides = [1, 1]} : vector<2x32xf32> to vector<1x32xf32>
    %c0_1 = arith.constant 0 : index
    %c0_2 = arith.constant 0 : index
    %3 = vector.load %arg0[%c0_1, %c0_2] : memref<8x16xf32, #tpu.memory_space<vmem>>, vector<8x16xf32>
    %c0_3 = arith.constant 0 : index
    %c0_4 = arith.constant 0 : index
    %4 = vector.load %arg1[%c0_3, %c0_4] : memref<16x32xf32, #tpu.memory_space<vmem>>, vector<16x32xf32>
    %cst = arith.constant dense<0.000000e+00> : vector<8x32xf32>
    %5 = tpu.matmul %3, %4, %cst {dimension_numbers = #tpu.dot_dimension_numbers<[1], [0], [0], [1], [0, 0, 1, 1], [], []>} : vector<8x16xf32>, vector<16x32xf32>, vector<8x32xf32> -> vector<8x32xf32>
    %6 = vector.broadcast %1 : vector<1x32xf32> to vector<8x32xf32>
    %7 = arith.addf %5, %6 : vector<8x32xf32>
    %8 = math.tanh %7 : vector<8x32xf32>
    %9 = vector.broadcast %2 : vector<1x32xf32> to vector<8x32xf32>
    %10 = arith.mulf %8, %9 : vector<8x32xf32>
    %cst_5 = arith.constant dense<0.000000e+00> : vector<8xf32>
    %11 = vector.multi_reduction <add>, %10, %cst_5 [1] : vector<8x32xf32> to vector<8xf32>
    %12 = vector.shape_cast %11 : vector<8xf32> to vector<8x1xf32>
    %c0_6 = arith.constant 0 : index
    %13 = memref.load %arg3[%c0_6] : memref<1xf32, #tpu.memory_space<smem>>
    %14 = vector.broadcast %13 : f32 to vector<8x1xf32>
    %15 = arith.addf %12, %14 : vector<8x1xf32>
    %16 = math.tanh %15 : vector<8x1xf32>
    %c0_7 = arith.constant 0 : index
    %c0_8 = arith.constant 0 : index
    %17 = vector.load %arg4[%c0_7, %c0_8] : memref<8x1xf32, #tpu.memory_space<vmem>>, vector<8x1xf32>
    tpu.vector_store %arg4[%c0_7, %c0_8], %16 {strides = array<i32>} : memref<8x1xf32, #tpu.memory_space<vmem>>, vector<8x1xf32>,
    return
  }
}

</mosaic_0001>

<llo_original>
// kernel: tpu_custom_call.1
$region0: #{tpu_custom_call.1}
  #allocation0 [shape = 'u32[]', space=smem, size = 0x4, offset = 0x4, fixed_abs, tag = 'smem constant byte address 0x4 - core index']
  #allocation1 [shape = 'u32[72,128]{1,0:T(1,128)}', space=vmem, size = 0x9000, scoped, tag = 'internal scratch']
  #allocation2 [shape = 'f32[1]{0:T(128)S(6)}', space=smem, size = 0x200, scoped, tag = 'scoped memory for tpu_custom_call.1']
  %s0 = inlined_call_operand.hbm [shape: f32[8,16], index: 0, kind: input, shape index: {}]
  %s1 = inlined_call_operand.hbm [shape: f32[16,32], index: 1, kind: input, shape index: {}]
  %s2 = inlined_call_operand.vmem [shape: f32[2,32], index: 2, kind: input, shape index: {}]
  %s3 = inlined_call_operand.<no memory space> [shape: f32[1], index: 3, kind: input, shape index: {}]
  %s4 = inlined_call_operand.vmem [shape: f32[8,1], index: 4, kind: output, shape index: {}]
  %s5 = sld [smem:[#allocation0]]
  $region34: #{tpu_custom_call.1} parent=0
    _
  %s7 = ssub.s32 1, %s5
  %s8 = scalar_select 0, %s7, %s5
  %9 = sst [smem:[#allocation2]] %s3
  $region1: #{tpu_custom_call.1} parent=0
    #allocation3 [shape = 'u8[4096]{0}', space=vmem, size = 0x1000, scoped, tag = 'input window, operand 0, single buffered']
    #allocation4 [shape = 's32[1]{0}', space=sflag, size = 0x4, scoped, tag = 'scoped memory for tpu_custom_call.1']
    #allocation5 [shape = 'u8[8192]{0}', space=vmem, size = 0x2000, scoped, tag = 'input window, operand 1, single buffered']
    #allocation6 [shape = 's32[1]{0}', space=sflag, size = 0x4, scoped, tag = 'scoped memory for tpu_custom_call.1']
    %10 = vsyncpa [#allocation4], 0
    %11 = vsyncpa [#allocation6], 0
    // Predicated region
    $region2: #{tpu_custom_call.1} parent=1 // pred_check
      _
    $region3: #{tpu_custom_call.1} parent=1 // pred_check_branch
      %13 = sbr.rel (0) target = $region5
    $region4: #{tpu_custom_call.1} parent=1 // pred_region
      %15 = vsyncadd [#allocation4], 0
      %s17 = sshll.u32 %s0, 4
      %s18 = int_to_ptr.hbm [resolvable:$true] %s17
      %s19 = sshll.u32 [#allocation3], 4
      %s20 = int_to_ptr.vmem [resolvable:$true] %s19
      %22 = dma.hbm_to_vmem [thread:$0]  %s18, 128, %s20, [#allocation4]
    $region5: #{tpu_custom_call.1} parent=1 // pred_fallthru
      _
    // Predicated region
    $region6: #{tpu_custom_call.1} parent=1 // pred_check
      _
    $region7: #{tpu_custom_call.1} parent=1 // pred_check_branch
      %24 = sbr.rel (0) target = $region9
    $region8: #{tpu_custom_call.1} parent=1 // pred_region
      %26 = vsyncadd [#allocation6], 0
      %s27 = sshll.u32 %s1, 4
      %s28 = int_to_ptr.hbm [resolvable:$true] %s27
      %s29 = sshll.u32 [#allocation5], 4
      %s30 = int_to_ptr.vmem [resolvable:$true] %s29
      %35 = dma.hbm_to_vmem [thread:$0]  %s28, 256, %s30, [#allocation6], 128, 128, 8
    $region9: #{tpu_custom_call.1} parent=1 // pred_fallthru
      _
    // Predicated region
    $region10: #{tpu_custom_call.1} parent=1 // pred_check
      _
    $region11: #{tpu_custom_call.1} parent=1 // pred_check_branch
      %37 = sbr.rel (0) target = $region13
    $region12: #{tpu_custom_call.1} parent=1 // pred_region
      _
    $region13: #{tpu_custom_call.1} parent=1 // pred_fallthru
      _
    // Predicated region
    $region14: #{tpu_custom_call.1} parent=1 // pred_check
      _
    $region15: #{tpu_custom_call.1} parent=1 // pred_check_branch
      %39 = sbr.rel (0) target = $region17
    $region16: #{tpu_custom_call.1} parent=1 // pred_region
      _
    $region17: #{tpu_custom_call.1} parent=1 // pred_fallthru
      _
    // Predicated region
    $region18: #{tpu_custom_call.1} parent=1 // pred_check
      _
    $region19: #{tpu_custom_call.1} parent=1 // pred_check_branch
      %41 = sbr.rel (0) target = $region21
    $region20: #{tpu_custom_call.1} parent=1 // pred_region
      %43 = dma.done [#allocation4], 128
    $region21: #{tpu_custom_call.1} parent=1 // pred_fallthru
      _
    // Predicated region
    $region22: #{tpu_custom_call.1} parent=1 // pred_check
      _
    $region23: #{tpu_custom_call.1} parent=1 // pred_check_branch
      %45 = sbr.rel (0) target = $region25
    $region24: #{tpu_custom_call.1} parent=1 // pred_region
      %47 = dma.done [#allocation6], 256
    $region25: #{tpu_custom_call.1} parent=1 // pred_fallthru
      _
    %v48 = vld [vmem:[%s2] sm:$0x3]
    %v49 = vld [vmem:[#allocation3] sm:$0xff]
    %v50 = vld [vmem:[#allocation5] sm:$0xff]
    %v51 = vld [vmem:[#allocation5 + $0x8] sm:$0xff]
    %v52 = vperm.slane %v48, 0
    %vm53 = vcmask 130048
    %v55 = vsel %vm53, %v49, 0
    %57 = vmatpush.msra.mxu0 0.0
    %58 = vmatpush.msra.mxu0 0.0
    %59 = vmatpush.msra.mxu0 0.0
    %60 = vmatpush.msra.mxu0 0.0
    %61 = vmatpush.msra.mxu0 0.0
    %62 = vmatpush.msra.mxu0 0.0
    %63 = vmatpush.msra.mxu0 0.0
    %64 = vmatpush.msra.mxu0 0.0
    %65 = vmatpush.msra.mxu0 0.0
    %66 = vmatpush.msra.mxu0 0.0
    %67 = vmatpush.msra.mxu0 0.0
    %68 = vmatpush.msra.mxu0 0.0
    %69 = vmatpush.msra.mxu0 0.0
    %70 = vmatpush.msra.mxu0 0.0
    %71 = vmatpush.msra.mxu0 %v51
    %72 = vmatpush.msra.mxu0 %v50
    %73 = vmatmul.f32.gmra.mxu0 %v55
    %v74 = vpop.f32.mrf.mxu0
    %v75 = vadd.f32 %v52, %v74
    %76 = vdwg.mxu0
    %v77 = vtanh.pop %v75
    %v78 = vperm.slane %v48, 1
    %v79 = vmul.f32 %v77, %v78
    %vm80 = vcmask 261120
    %v81 = vsel %vm80, %v79, 0.0
    %82 = vadd.xlane.f32.xlu0 %v81
    %v83 = vpop.xlane.xlu0 %82
    %s84 = sld [smem:[#allocation2]]
    %v85 = vstv %s84
    %v86 = vadd.f32 %v83, %v85
    %v87 = vtanh.pop %v86
    %vm88 = vcmask 7168
    %89 = vst.msk [vmem:[%s4] sm:$0xff] %vm88, %v87
    // Predicated region
    $region26: #{tpu_custom_call.1} parent=1 // pred_check
      _
    $region27: #{tpu_custom_call.1} parent=1 // pred_check_branch
      %91 = sbr.rel (0) target = $region29
    $region28: #{tpu_custom_call.1} parent=1 // pred_region
      _
    $region29: #{tpu_custom_call.1} parent=1 // pred_fallthru
      _
    // Predicated region
    $region30: #{tpu_custom_call.1} parent=1 // pred_check
      _
    $region31: #{tpu_custom_call.1} parent=1 // pred_check_branch
      %93 = sbr.rel (0) target = $region33
    $region32: #{tpu_custom_call.1} parent=1 // pred_region
      _
    $region33: #{tpu_custom_call.1} parent=1 // pred_fallthru
      _
    %94 = vsyncpa [#allocation4], 1
    %95 = vsyncpa [#allocation6], 1

</llo_original>
